<compile_context>
chip_gen: v5e
topology: v5e:2x2
jax: 0.10.0
libtpu: 0.0.40
codegen_flags: <defaults>
</compile_context>

<pallas_src>
import math

import jax
import jax.numpy as jnp
from jax.experimental import pallas as pl
from jax.experimental.pallas import tpu as pltpu


def _round_up(x, m):
    return ((x + m - 1) // m) * m


# ----------------------------- Pallas kernel ---------------------------------


def _fused_hyperfc_kernel(x_ref, w1_ref, b_ref, w2_ref, w3_ref, out_ref):
    """All 5 FCBlocks fused: 3 matmuls on concatenated / block-structured weights."""
    hp = w1_ref.shape[1]          # padded fused hidden width (256)
    ow = out_ref.shape[1]         # padded fused output width (384)
    b1 = b_ref[0:1, 0:hp]
    b2 = b_ref[1:2, 0:hp]
    b3 = b_ref[2:3, 0:ow]

    x = x_ref[...]
    h = jnp.dot(x, w1_ref[...], preferred_element_type=jnp.float32) + b1
    h = jnp.maximum(h, 0.0)
    h = jnp.dot(h, w2_ref[...], preferred_element_type=jnp.float32) + b2
    h = jnp.maximum(h, 0.0)
    out = jnp.dot(h, w3_ref[...], preferred_element_type=jnp.float32) + b3
    out_ref[...] = out.astype(out_ref.dtype)


def run_fused_hyperfc(x, packed, *, max_tile=512):
    """One pallas_call computing all 5 hypernetwork FCBlocks at once.

    x: (batch, hyper_in_ch) f32.
    packed: (W1, bias_slab, W2, W3) in (in, out) layout, widths padded to 128*k.
    Returns (batch, padded_out_width) f32.
    """
    w1, bias, w2, w3 = packed
    batch, hyper_in = x.shape
    out_width = w3.shape[1]

    # Batch tiling: multiple of 8 (f32 sublane); 512 for large batches (multiple of
    # the MXU M dim on all of v5e/v6e/v7x), shrunk for tiny inputs.
    b8 = _round_up(batch, 8)
    tb = min(max_tile, b8)
    b_pad = _round_up(b8, tb)
    if b_pad != batch:
        x = jnp.pad(x, ((0, b_pad - batch), (0, 0)))

    grid = (b_pad // tb,)

    flops = 2 * b_pad * (w1.shape[0] * w1.shape[1]
                         + w2.shape[0] * w2.shape[1]
                         + w3.shape[0] * w3.shape[1])
    bytes_accessed = 4 * (b_pad * hyper_in + w1.size + bias.size + w2.size
                          + w3.size + b_pad * out_width)

    fused = pl.pallas_call(
        _fused_hyperfc_kernel,
        out_shape=jax.ShapeDtypeStruct((b_pad, out_width), jnp.float32),
        grid=grid,
        in_specs=[
            # streamed per batch tile
            pl.BlockSpec((tb, hyper_in), lambda i: (i, 0)),
            # weights / biases: constant block index -> DMA'd once, VMEM-resident
            pl.BlockSpec(w1.shape, lambda i: (0, 0)),
            pl.BlockSpec(bias.shape, lambda i: (0, 0)),
            pl.BlockSpec(w2.shape, lambda i: (0, 0)),
            pl.BlockSpec(w3.shape, lambda i: (0, 0)),
        ],
        out_specs=pl.BlockSpec((tb, out_width), lambda i: (i, 0)),
        compiler_params=pltpu.CompilerParams(
            dimension_semantics=("parallel",)),
        cost_estimate=pl.CostEstimate(flops=flops, transcendentals=0,
                                      bytes_accessed=bytes_accessed),
    )(x, w1, bias, w2, w3)
    return fused[:batch]


# --------------------------- parameter setup (glue) ---------------------------


def _kaiming_normal(key, out_f, in_f, scale=1.0):
    # nn.init.kaiming_normal_(a=0, nonlinearity='relu', mode='fan_in'): std = sqrt(2/fan_in)
    std = math.sqrt(2.0 / in_f)
    return (scale * std) * jax.random.normal(key, (out_f, in_f), jnp.float32)


def _linear_bias(key, out_f, in_f):
    # PyTorch nn.Linear default bias init: U(-1/sqrt(fan_in), 1/sqrt(fan_in)).
    bound = 1.0 / math.sqrt(in_f)
    return jax.random.uniform(key, (1, out_f), jnp.float32, -bound, bound)


def init_hyper_linear_params(key, in_ch, out_ch, hyper_in_ch, hyper_hidden_ch):
    """Parameters of one HyperLinear's FCBlock (hyper_num_hidden_layers == 1)."""
    out_features = in_ch * out_ch + out_ch
    k = jax.random.split(key, 6)
    w1 = _kaiming_normal(k[0], hyper_hidden_ch, hyper_in_ch)
    b1 = _linear_bias(k[1], hyper_hidden_ch, hyper_in_ch)
    w2 = _kaiming_normal(k[2], hyper_hidden_ch, hyper_hidden_ch)
    b2 = _linear_bias(k[3], hyper_hidden_ch, hyper_hidden_ch)
    # last layer: kaiming_normal then *= 0.1 (last_hyper_layer_init)
    w3 = _kaiming_normal(k[4], out_features, hyper_hidden_ch, scale=0.1)
    b3 = _linear_bias(k[5], out_features, hyper_hidden_ch)
    return (w1, b1, w2, b2, w3, b3)


def _pack_params(per_block_params, layer_specs, hyper_hidden_ch):
    """Pack 5 FCBlocks into concatenated / block-structured (in, out)-layout weights.

    Done ONCE at init (pre-transposed, zero-padded).  The fused hidden width is padded
    to a multiple of 128 lanes (160 -> 256) so intermediates are lane-dense, and the
    three bias vectors are packed into one (8, out_pad) slab (fewer kernel inputs).
    Zero padding is inert through ReLU, so the math is unchanged.
    """
    n = len(per_block_params)
    H = hyper_hidden_ch
    hp = _round_up(n * H, 128)          # fused hidden width, lane-dense (160 -> 256)

    out_feats = [i * o + o for (i, o, _) in layer_specs]
    offsets = [0]
    for f in out_feats:
        offsets.append(offsets[-1] + f)
    total = offsets[-1]
    total_pad = _round_up(total, 128)   # lane-dense output width (368 -> 384)
    bw = max(hp, total_pad)             # bias-slab width

    w1p = jnp.zeros((per_block_params[0][0].shape[1], hp), jnp.float32)
    w2p = jnp.zeros((hp, hp), jnp.float32)          # block diagonal
    w3p = jnp.zeros((hp, total_pad), jnp.float32)   # block structured
    bias = jnp.zeros((8, bw), jnp.float32)          # rows: b1 | b2 | b3 (sublane-padded)

    for i, p in enumerate(per_block_params):
        c0, c1 = i * H, (i + 1) * H
        w1p = w1p.at[:, c0:c1].set(p[0].T)
        bias = bias.at[0, c0:c1].set(p[1][0])
        w2p = w2p.at[c0:c1, c0:c1].set(p[2].T)
        bias = bias.at[1, c0:c1].set(p[3][0])
        w3p = w3p.at[c0:c1, offsets[i]:offsets[i + 1]].set(p[4].T)
        bias = bias.at[2, offsets[i]:offsets[i + 1]].set(p[5][0])

    return (w1p, bias, w2p, w3p), offsets


class HyperFCInstant:
    """JAX/Pallas port of HyperFC_instant (forward fused into one kernel launch)."""

    def __init__(self, key, in_ch_pos, in_ch_view, out_ch, hyper_in_ch=32,
                 hyper_num_hidden_layers=1, hyper_hidden_ch=32, hidden_ch=4,
                 num_hidden_layers=6):
        del in_ch_pos, num_hidden_layers  # unused by the reference module's layer list
        assert hyper_num_hidden_layers == 1, "kernel hardcodes FCBlock depth (1 hidden layer)"
        # (in_ch, out_ch, has_layernorm_relu) of each predicted layer
        self.layer_specs = [
            (hidden_ch, hidden_ch * 4, False),                  # HyperLinear
            (hidden_ch * 4 + in_ch_view, hidden_ch * 2, True),  # HyperLayer
            (hidden_ch * 2, hidden_ch * 2, True),               # HyperLayer
            (hidden_ch * 2, hidden_ch, True),                   # HyperLayer
            (hidden_ch, out_ch, False),                         # HyperLinear
        ]
        keys = jax.random.split(key, len(self.layer_specs))
        # Per-block params in PyTorch (out, in) convention (kept for reference checks).
        self.params = [
            init_hyper_linear_params(kk, i, o, hyper_in_ch, hyper_hidden_ch)
            for kk, (i, o, _) in zip(keys, self.layer_specs)
        ]
        # One-time packing: pre-transposed, concatenated / block-diagonal weights.
        self.packed, self.offsets = _pack_params(self.params, self.layer_specs,
                                                 hyper_hidden_ch)

    def __call__(self, hyper_input):
        # The PyTorch forward returns a list of nn.Modules (BatchLinear, optionally
        # followed by a parameter-free LayerNorm+ReLU).  Here we return the predicted
        # per-layer weights/biases (the only numerical outputs) plus a flag marking
        # layers that carry LayerNorm+ReLU in the predicted net.
        # TODO(synk): the returned LayerNorm+ReLU are parameter-free ops applied when the
        # predicted net is evaluated; they are represented by the `layernorm_relu` flag.
        batch = hyper_input.shape[0]
        fused = run_fused_hyperfc(hyper_input, self.packed)  # (B, 384)

        net = []
        for (in_ch, out_ch, has_norm), off in zip(self.layer_specs, self.offsets[:-1]):
            w_end = off + in_ch * out_ch
            weights = fused[:, off:w_end].reshape(batch, out_ch, in_ch)
            biases = fused[:, w_end:w_end + out_ch].reshape(batch, 1, out_ch)
            net.append({"weights": weights, "biases": biases,
                        "layernorm_relu": has_norm})
        return net


# ------------------------------- reference -----------------------------------


def _ref_fcblock(x, params):
    w1, b1, w2, b2, w3, b3 = params
    h = jnp.maximum(x @ w1.T + b1, 0.0)
    h = jnp.maximum(h @ w2.T + b2, 0.0)
    return h @ w3.T + b3


# --------------------------------- main ---------------------------------------


if __name__ == "__main__":
    key = jax.random.PRNGKey(0)
    k_params, k_input = jax.random.split(key)

    # small shapes consistent with the module
    batch = 2
    in_ch_pos, in_ch_view, out_ch = 4, 3, 4
    hyper_in_ch, hyper_hidden_ch, hidden_ch = 32, 32, 4

    model = HyperFCInstant(k_params, in_ch_pos, in_ch_view, out_ch,
                           hyper_in_ch=hyper_in_ch,
                           hyper_num_hidden_layers=1,
                           hyper_hidden_ch=hyper_hidden_ch,
                           hidden_ch=hidden_ch)

    hyper_input = jax.random.normal(k_input, (batch, hyper_in_ch), jnp.float32)

    net = model(hyper_input)
    jax.block_until_ready([(l["weights"], l["biases"]) for l in net])

    # sanity check against a plain-JAX reference of the same computation
    for layer, (spec, params) in zip(net, zip(model.layer_specs, model.params)):
        in_c, out_c, _ = spec
        ref = _ref_fcblock(hyper_input, params)
        ref_w = ref[..., : in_c * out_c].reshape(batch, out_c, in_c)
        ref_b = ref[..., in_c * out_c: in_c * out_c + out_c].reshape(batch, 1, out_c)
        assert jnp.allclose(layer["weights"], ref_w, atol=1e-4, rtol=1e-4)
        assert jnp.allclose(layer["biases"], ref_b, atol=1e-4, rtol=1e-4)

    print("KERNEL_OK")
</pallas_src>

<mosaic_0001>
module attributes {stable_mosaic.version = 11 : i64} {
  func.func @_fused_hyperfc_kernel(%arg0: i32, %arg1: memref<8x32xf32, #tpu.memory_space<vmem>>, %arg2: memref<32x256xf32, #tpu.memory_space<vmem>>, %arg3: memref<8x384xf32, #tpu.memory_space<vmem>>, %arg4: memref<256x256xf32, #tpu.memory_space<vmem>>, %arg5: memref<256x384xf32, #tpu.memory_space<vmem>>, %arg6: memref<8x384xf32, #tpu.memory_space<vmem>>) attributes {dimension_semantics = [#tpu.dimension_semantics<parallel>], iteration_bounds = array<i64: 1>, scalar_prefetch = 0 : i64, scratch_operands = 0 : i64, tpu.core_type = #tpu.core_type<tc>, window_params = [{transform_indices = @transform_0, window_bounds = array<i64: 8, 32>}, {pipeline_mode = #tpu.pipeline_mode<synchronous>, transform_indices = @transform_1, window_bounds = array<i64: 32, 256>}, {pipeline_mode = #tpu.pipeline_mode<synchronous>, transform_indices = @transform_2, window_bounds = array<i64: 8, 384>}, {pipeline_mode = #tpu.pipeline_mode<synchronous>, transform_indices = @transform_3, window_bounds = array<i64: 256, 256>}, {pipeline_mode = #tpu.pipeline_mode<synchronous>, transform_indices = @transform_4, window_bounds = array<i64: 256, 384>}, {transform_indices = @transform_5, window_bounds = array<i64: 8, 384>}]} {
    %c0 = arith.constant 0 : index
    %c0_0 = arith.constant 0 : index
    %0 = vector.load %arg3[%c0, %c0_0] : memref<8x384xf32, #tpu.memory_space<vmem>>, vector<1x256xf32>
    %c1 = arith.constant 1 : index
    %c0_1 = arith.constant 0 : index
    %1 = vector.load %arg3[%c1, %c0_1] : memref<8x384xf32, #tpu.memory_space<vmem>>, vector<1x256xf32>
    %c2 = arith.constant 2 : index
    %c0_2 = arith.constant 0 : index
    %2 = vector.load %arg3[%c2, %c0_2] : memref<8x384xf32, #tpu.memory_space<vmem>>, vector<1x384xf32>
    %c0_3 = arith.constant 0 : index
    %c0_4 = arith.constant 0 : index
    %3 = vector.load %arg1[%c0_3, %c0_4] : memref<8x32xf32, #tpu.memory_space<vmem>>, vector<8x32xf32>
    %c0_5 = arith.constant 0 : index
    %c0_6 = arith.constant 0 : index
    %4 = vector.load %arg2[%c0_5, %c0_6] : memref<32x256xf32, #tpu.memory_space<vmem>>, vector<32x256xf32>
    %cst = arith.constant dense<0.000000e+00> : vector<8x256xf32>
    %5 = tpu.matmul %3, %4, %cst {dimension_numbers = #tpu.dot_dimension_numbers<[1], [0], [0], [1], [0, 0, 1, 1], [], []>} : vector<8x32xf32>, vector<32x256xf32>, vector<8x256xf32> -> vector<8x256xf32>
    %6 = vector.broadcast %0 : vector<1x256xf32> to vector<8x256xf32>
    %7 = arith.addf %5, %6 : vector<8x256xf32>
    %cst_7 = arith.constant 0.000000e+00 : f32
    %8 = vector.broadcast %cst_7 : f32 to vector<8x256xf32>
    %9 = arith.maximumf %7, %8 : vector<8x256xf32>
    %c0_8 = arith.constant 0 : index
    %c0_9 = arith.constant 0 : index
    %10 = vector.load %arg4[%c0_8, %c0_9] : memref<256x256xf32, #tpu.memory_space<vmem>>, vector<256x256xf32>
    %cst_10 = arith.constant dense<0.000000e+00> : vector<8x256xf32>
    %11 = tpu.matmul %9, %10, %cst_10 {dimension_numbers = #tpu.dot_dimension_numbers<[1], [0], [0], [1], [0, 0, 1, 1], [], []>} : vector<8x256xf32>, vector<256x256xf32>, vector<8x256xf32> -> vector<8x256xf32>
    %12 = vector.broadcast %1 : vector<1x256xf32> to vector<8x256xf32>
    %13 = arith.addf %11, %12 : vector<8x256xf32>
    %cst_11 = arith.constant 0.000000e+00 : f32
    %14 = vector.broadcast %cst_11 : f32 to vector<8x256xf32>
    %15 = arith.maximumf %13, %14 : vector<8x256xf32>
    %c0_12 = arith.constant 0 : index
    %c0_13 = arith.constant 0 : index
    %16 = vector.load %arg5[%c0_12, %c0_13] : memref<256x384xf32, #tpu.memory_space<vmem>>, vector<256x384xf32>
    %cst_14 = arith.constant dense<0.000000e+00> : vector<8x384xf32>
    %17 = tpu.matmul %15, %16, %cst_14 {dimension_numbers = #tpu.dot_dimension_numbers<[1], [0], [0], [1], [0, 0, 1, 1], [], []>} : vector<8x256xf32>, vector<256x384xf32>, vector<8x384xf32> -> vector<8x384xf32>
    %18 = vector.broadcast %2 : vector<1x384xf32> to vector<8x384xf32>
    %19 = arith.addf %17, %18 : vector<8x384xf32>
    %c0_15 = arith.constant 0 : index
    %c0_16 = arith.constant 0 : index
    %20 = vector.load %arg6[%c0_15, %c0_16] : memref<8x384xf32, #tpu.memory_space<vmem>>, vector<8x384xf32>
    tpu.vector_store %arg6[%c0_15, %c0_16], %19 {strides = array<i32>} : memref<8x384xf32, #tpu.memory_space<vmem>>, vector<8x384xf32>,
    return
  }
  func.func @transform_0(%arg0: i32) -> (i32, i32) {
    %c0_i32 = arith.constant 0 : i32
    %c0_i32_0 = arith.constant 0 : i32
    return %arg0, %c0_i32 : i32, i32
  }
  func.func @transform_1(%arg0: i32) -> (i32, i32) {
    %c0_i32 = arith.constant 0 : i32
    %c0_i32_0 = arith.constant 0 : i32
    %c0_i32_1 = arith.constant 0 : i32
    return %c0_i32, %c0_i32_0 : i32, i32
  }
  func.func @transform_2(%arg0: i32) -> (i32, i32) {
    %c0_i32 = arith.constant 0 : i32
    %c0_i32_0 = arith.constant 0 : i32
    %c0_i32_1 = arith.constant 0 : i32
    return %c0_i32, %c0_i32_0 : i32, i32
  }
  func.func @transform_3(%arg0: i32) -> (i32, i32) {
    %c0_i32 = arith.constant 0 : i32
    %c0_i32_0 = arith.constant 0 : i32
    %c0_i32_1 = arith.constant 0 : i32
    return %c0_i32, %c0_i32_0 : i32, i32
  }
  func.func @transform_4(%arg0: i32) -> (i32, i32) {
    %c0_i32 = arith.constant 0 : i32
    %c0_i32_0 = arith.constant 0 : i32
    %c0_i32_1 = arith.constant 0 : i32
    return %c0_i32, %c0_i32_0 : i32, i32
  }
  func.func @transform_5(%arg0: i32) -> (i32, i32) {
    %c0_i32 = arith.constant 0 : i32
    %c0_i32_0 = arith.constant 0 : i32
    return %arg0, %c0_i32 : i32, i32
  }
}

</mosaic_0001>

<llo_original>
// kernel: tpu_custom_call.1
$region0: #{tpu_custom_call.1}
  #allocation0 [shape = 'u32[]', space=smem, size = 0x4, offset = 0x4, fixed_abs, tag = 'smem constant byte address 0x4 - core index']
  #allocation1 [shape = 'u32[72,128]{1,0:T(1,128)}', space=vmem, size = 0x9000, scoped, tag = 'internal scratch']
  %s0 = inlined_call_operand.hbm [shape: f32[8,32], index: 0, kind: input, shape index: {}]
  %s1 = inlined_call_operand.hbm [shape: f32[32,256], index: 1, kind: input, shape index: {}]
  %s2 = inlined_call_operand.hbm [shape: f32[8,384], index: 2, kind: input, shape index: {}]
  %s3 = inlined_call_operand.hbm [shape: f32[256,256], index: 3, kind: input, shape index: {}]
  %s4 = inlined_call_operand.hbm [shape: f32[256,384], index: 4, kind: input, shape index: {}]
  %s5 = inlined_call_operand.hbm [shape: f32[8,384], index: 5, kind: output, shape index: {}]
  %s6 = sld [smem:[#allocation0]]
  $region50: #{tpu_custom_call.1} parent=0
    _
  %s8 = ssub.s32 1, %s6
  %s9 = scalar_select 0, %s8, %s6
  $region1: #{tpu_custom_call.1} parent=0
    #allocation2 [shape = 'u8[4096]{0}', space=vmem, size = 0x1000, scoped, tag = 'input window, operand 0, single buffered']
    #allocation3 [shape = 's32[1]{0}', space=sflag, size = 0x4, scoped, tag = 'scoped memory for tpu_custom_call.1']
    #allocation4 [shape = 's32[1]{0}', space=sflag, size = 0x4, scoped, tag = 'scoped memory for tpu_custom_call.1']
    #allocation5 [shape = 'u8[32768]{0}', space=vmem, size = 0x8000, scoped, tag = 'input window, operand 1, single buffered']
    #allocation6 [shape = 's32[1]{0}', space=sflag, size = 0x4, scoped, tag = 'scoped memory for tpu_custom_call.1']
    #allocation7 [shape = 'u8[12288]{0}', space=vmem, size = 0x3000, scoped, tag = 'input window, operand 2, single buffered']
    #allocation8 [shape = 'u8[262144]{0}', space=vmem, size = 0x40000, scoped, tag = 'input window, operand 3, single buffered']
    #allocation9 [shape = 's32[1]{0}', space=sflag, size = 0x4, scoped, tag = 'scoped memory for tpu_custom_call.1']
    #allocation10 [shape = 'u8[393216]{0}', space=vmem, size = 0x60000, scoped, tag = 'input window, operand 4, single buffered']
    #allocation11 [shape = 'u8[12288]{0}', space=vmem, size = 0x3000, scoped, tag = 'output window, operand 0, single buffered']
    %10 = vsyncpa [#allocation3], 0
    %11 = vsyncpa [#allocation6], 0
    %12 = vsyncpa [#allocation9], 0
    %13 = vsyncpa [#allocation4], 0
    // Predicated region
    $region2: #{tpu_custom_call.1} parent=1 // pred_check
      _
    $region3: #{tpu_custom_call.1} parent=1 // pred_check_branch
      %15 = sbr.rel (0) target = $region5
    $region4: #{tpu_custom_call.1} parent=1 // pred_region
      %17 = vsyncadd [#allocation3], 0
      %s19 = sshll.u32 %s0, 4
      %s20 = int_to_ptr.hbm [resolvable:$true] %s19
      %s21 = sshll.u32 [#allocation2], 4
      %s22 = int_to_ptr.vmem [resolvable:$true] %s21
      %24 = dma.hbm_to_vmem [thread:$0]  %s20, 128, %s22, [#allocation3]
    $region5: #{tpu_custom_call.1} parent=1 // pred_fallthru
      _
    // Predicated region
    $region6: #{tpu_custom_call.1} parent=1 // pred_check
      _
    $region7: #{tpu_custom_call.1} parent=1 // pred_check_branch
      %26 = sbr.rel (0) target = $region9
    $region8: #{tpu_custom_call.1} parent=1 // pred_region
      %28 = vsyncadd [#allocation6], 0
      %s29 = sshll.u32 %s1, 4
      %s30 = int_to_ptr.hbm [resolvable:$true] %s29
      %s31 = sshll.u32 [#allocation5], 4
      %s32 = int_to_ptr.vmem [resolvable:$true] %s31
      %37 = dma.hbm_to_vmem [thread:$0]  %s30, 1024, %s32, [#allocation6], 256, 256, 16
    $region9: #{tpu_custom_call.1} parent=1 // pred_fallthru
      _
    // Predicated region
    $region10: #{tpu_custom_call.1} parent=1 // pred_check
      _
    $region11: #{tpu_custom_call.1} parent=1 // pred_check_branch
      %39 = sbr.rel (0) target = $region13
    $region12: #{tpu_custom_call.1} parent=1 // pred_region
      %41 = vsyncadd [#allocation6], 0
      %s43 = sshll.u32 %s2, 4
      %s44 = int_to_ptr.hbm [resolvable:$true] %s43
      %s45 = sshll.u32 [#allocation7], 4
      %s46 = int_to_ptr.vmem [resolvable:$true] %s45
      %48 = dma.hbm_to_vmem [thread:$0]  %s44, 384, %s46, [#allocation6]
    $region13: #{tpu_custom_call.1} parent=1 // pred_fallthru
      _
    // Predicated region
    $region14: #{tpu_custom_call.1} parent=1 // pred_check
      _
    $region15: #{tpu_custom_call.1} parent=1 // pred_check_branch
      %50 = sbr.rel (0) target = $region17
    $region16: #{tpu_custom_call.1} parent=1 // pred_region
      %52 = vsyncadd [#allocation9], 0
      %s53 = sshll.u32 %s3, 4
      %s54 = int_to_ptr.hbm [resolvable:$true] %s53
      %s55 = sshll.u32 [#allocation8], 4
      %s56 = int_to_ptr.vmem [resolvable:$true] %s55
      %61 = dma.hbm_to_vmem [thread:$0]  %s54, 8192, %s56, [#allocation9], 256, 256, 16
    $region17: #{tpu_custom_call.1} parent=1 // pred_fallthru
      _
    // Predicated region
    $region18: #{tpu_custom_call.1} parent=1 // pred_check
      _
    $region19: #{tpu_custom_call.1} parent=1 // pred_check_branch
      %63 = sbr.rel (0) target = $region21
    $region20: #{tpu_custom_call.1} parent=1 // pred_region
      %65 = vsyncadd [#allocation9], 0
      %s66 = sshll.u32 %s4, 4
      %s67 = int_to_ptr.hbm [resolvable:$true] %s66
      %s68 = sshll.u32 [#allocation10], 4
      %s69 = int_to_ptr.vmem [resolvable:$true] %s68
      %74 = dma.hbm_to_vmem [thread:$0]  %s67, 12288, %s69, [#allocation9], 384, 384, 24
    $region21: #{tpu_custom_call.1} parent=1 // pred_fallthru
      _
    // Predicated region
    $region22: #{tpu_custom_call.1} parent=1 // pred_check
      _
    $region23: #{tpu_custom_call.1} parent=1 // pred_check_branch
      %76 = sbr.rel (0) target = $region25
    $region24: #{tpu_custom_call.1} parent=1 // pred_region
      %78 = dma.done [#allocation3], 128
    $region25: #{tpu_custom_call.1} parent=1 // pred_fallthru
      _
    // Predicated region
    $region26: #{tpu_custom_call.1} parent=1 // pred_check
      _
    $region27: #{tpu_custom_call.1} parent=1 // pred_check_branch
      %80 = sbr.rel (0) target = $region29
    $region28: #{tpu_custom_call.1} parent=1 // pred_region
      %82 = dma.done [#allocation6], 1024
    $region29: #{tpu_custom_call.1} parent=1 // pred_fallthru
      _
    // Predicated region
    $region30: #{tpu_custom_call.1} parent=1 // pred_check
      _
    $region31: #{tpu_custom_call.1} parent=1 // pred_check_branch
      %84 = sbr.rel (0) target = $region33
    $region32: #{tpu_custom_call.1} parent=1 // pred_region
      %86 = dma.done [#allocation6], 384
    $region33: #{tpu_custom_call.1} parent=1 // pred_fallthru
      _
    // Predicated region
    $region34: #{tpu_custom_call.1} parent=1 // pred_check
      _
    $region35: #{tpu_custom_call.1} parent=1 // pred_check_branch
      %88 = sbr.rel (0) target = $region37
    $region36: #{tpu_custom_call.1} parent=1 // pred_region
      %90 = dma.done [#allocation9], 8192
    $region37: #{tpu_custom_call.1} parent=1 // pred_fallthru
      _
    // Predicated region
    $region38: #{tpu_custom_call.1} parent=1 // pred_check
      _
    $region39: #{tpu_custom_call.1} parent=1 // pred_check_branch
      %92 = sbr.rel (0) target = $region41
    $region40: #{tpu_custom_call.1} parent=1 // pred_region
      %94 = dma.done [#allocation9], 12288
    $region41: #{tpu_custom_call.1} parent=1 // pred_fallthru
      _
    %v95 = vld [vmem:[#allocation7] ss:$8 sm:$0x3]
    %s96 = scalar_lea.vmem [#allocation7], 1
    %v97 = vld [vmem:[%s96] ss:$8 sm:$0x3]
    %s98 = scalar_lea.vmem [#allocation7], 2
    %v99 = vld [vmem:[%s98] ss:$8 sm:$0x7]
    %v100 = vld [vmem:[#allocation2] sm:$0xff]
    %v101 = vld [vmem:[#allocation5] sm:$0xff]
    %v102 = vld [vmem:[#allocation5 + $0x8] sm:$0xff]
    %v103 = vld [vmem:[#allocation5 + $0x10] sm:$0xff]
    %v104 = vld [vmem:[#allocation5 + $0x18] sm:$0xff]
    %v105 = vld [vmem:[#allocation5 + $0x20] sm:$0xff]
    %v106 = vld [vmem:[#allocation5 + $0x28] sm:$0xff]
    %v107 = vld [vmem:[#allocation5 + $0x30] sm:$0xff]
    %v108 = vld [vmem:[#allocation5 + $0x38] sm:$0xff]
    %v110 = vperm.slane %v95, 0
    %v111 = vperm.slane %v95, 1
    %vm114 = vcmask 261120
    %v116 = vsel %vm114, %v100, 0
    %118 = vmatpush.msra.mxu0 0.0
    %119 = vmatpush.msra.mxu0 0.0
    %120 = vmatpush.msra.mxu0 0.0
    %121 = vmatpush.msra.mxu0 0.0
    %122 = vmatpush.msra.mxu0 0.0
    %123 = vmatpush.msra.mxu0 0.0
    %124 = vmatpush.msra.mxu0 0.0
    %125 = vmatpush.msra.mxu0 0.0
    %126 = vmatpush.msra.mxu0 0.0
    %127 = vmatpush.msra.mxu0 0.0
    %128 = vmatpush.msra.mxu0 0.0
    %129 = vmatpush.msra.mxu0 0.0
    %130 = vmatpush.msra.mxu0 %v107
    %131 = vmatpush.msra.mxu0 %v105
    %132 = vmatpush.msra.mxu0 %v103
    %133 = vmatpush.msra.mxu0 %v101
    %134 = vmatmul.f32.gmra.mxu0 %v116
    %v135 = vpop.f32.mrf.mxu0
    %v136 = vadd.f32 %v110, %v135
    %137 = vdwg.mxu0
    %138 = vmatpush.msra.mxu0 0.0
    %139 = vmatpush.msra.mxu0 0.0
    %140 = vmatpush.msra.mxu0 0.0
    %141 = vmatpush.msra.mxu0 0.0
    %142 = vmatpush.msra.mxu0 0.0
    %143 = vmatpush.msra.mxu0 0.0
    %144 = vmatpush.msra.mxu0 0.0
    %145 = vmatpush.msra.mxu0 0.0
    %146 = vmatpush.msra.mxu0 0.0
    %147 = vmatpush.msra.mxu0 0.0
    %148 = vmatpush.msra.mxu0 0.0
    %149 = vmatpush.msra.mxu0 0.0
    %150 = vmatpush.msra.mxu0 %v108
    %151 = vmatpush.msra.mxu0 %v106
    %152 = vmatpush.msra.mxu0 %v104
    %153 = vmatpush.msra.mxu0 %v102
    %154 = vmatmul.f32.gmra.mxu0 %v116
    %v155 = vpop.f32.mrf.mxu0
    %v156 = vadd.f32 %v111, %v155
    %157 = vdwg.mxu0
    %v158 = vmax.f32 %v136, 0.0
    %v159 = vmax.f32 %v156, 0.0
    %v160 = vld [vmem:[#allocation8] sm:$0xff]
    %v161 = vld [vmem:[#allocation8 + $0x8] sm:$0xff]
    %v162 = vld [vmem:[#allocation8 + $0x10] sm:$0xff]
    %v163 = vld [vmem:[#allocation8 + $0x18] sm:$0xff]
    %v164 = vld [vmem:[#allocation8 + $0x20] sm:$0xff]
    %v165 = vld [vmem:[#allocation8 + $0x28] sm:$0xff]
    %v166 = vld [vmem:[#allocation8 + $0x30] sm:$0xff]
    %v167 = vld [vmem:[#allocation8 + $0x38] sm:$0xff]
    %v168 = vld [vmem:[#allocation8 + $0x40] sm:$0xff]
    %v169 = vld [vmem:[#allocation8 + $0x48] sm:$0xff]
    %v170 = vld [vmem:[#allocation8 + $0x50] sm:$0xff]
    %v171 = vld [vmem:[#allocation8 + $0x58] sm:$0xff]
    %v172 = vld [vmem:[#allocation8 + $0x60] sm:$0xff]
    %v173 = vld [vmem:[#allocation8 + $0x68] sm:$0xff]
    %v174 = vld [vmem:[#allocation8 + $0x70] sm:$0xff]
    %v175 = vld [vmem:[#allocation8 + $0x78] sm:$0xff]
    %v176 = vld [vmem:[#allocation8 + $0x80] sm:$0xff]
    %v177 = vld [vmem:[#allocation8 + $0x88] sm:$0xff]
    %v178 = vld [vmem:[#allocation8 + $0x90] sm:$0xff]
    %v179 = vld [vmem:[#allocation8 + $0x98] sm:$0xff]
    %v180 = vld [vmem:[#allocation8 + $0xa0] sm:$0xff]
    %v181 = vld [vmem:[#allocation8 + $0xa8] sm:$0xff]
    %v182 = vld [vmem:[#allocation8 + $0xb0] sm:$0xff]
    %v183 = vld [vmem:[#allocation8 + $0xb8] sm:$0xff]
    %v184 = vld [vmem:[#allocation8 + $0xc0] sm:$0xff]
    %v185 = vld [vmem:[#allocation8 + $0xc8] sm:$0xff]
    %v186 = vld [vmem:[#allocation8 + $0xd0] sm:$0xff]
    %v187 = vld [vmem:[#allocation8 + $0xd8] sm:$0xff]
    %v188 = vld [vmem:[#allocation8 + $0xe0] sm:$0xff]
    %v189 = vld [vmem:[#allocation8 + $0xe8] sm:$0xff]
    %v190 = vld [vmem:[#allocation8 + $0xf0] sm:$0xff]
    %v191 = vld [vmem:[#allocation8 + $0xf8] sm:$0xff]
    %v192 = vld [vmem:[#allocation8 + $0x100] sm:$0xff]
    %v193 = vld [vmem:[#allocation8 + $0x108] sm:$0xff]
    %v194 = vld [vmem:[#allocation8 + $0x110] sm:$0xff]
    %v195 = vld [vmem:[#allocation8 + $0x118] sm:$0xff]
    %v196 = vld [vmem:[#allocation8 + $0x120] sm:$0xff]
    %v197 = vld [vmem:[#allocation8 + $0x128] sm:$0xff]
    %v198 = vld [vmem:[#allocation8 + $0x130] sm:$0xff]
    %v199 = vld [vmem:[#allocation8 + $0x138] sm:$0xff]
    %v200 = vld [vmem:[#allocation8 + $0x140] sm:$0xff]
    %v201 = vld [vmem:[#allocation8 + $0x148] sm:$0xff]
    %v202 = vld [vmem:[#allocation8 + $0x150] sm:$0xff]
    %v203 = vld [vmem:[#allocation8 + $0x158] sm:$0xff]
    %v204 = vld [vmem:[#allocation8 + $0x160] sm:$0xff]
    %v205 = vld [vmem:[#allocation8 + $0x168] sm:$0xff]
    %v206 = vld [vmem:[#allocation8 + $0x170] sm:$0xff]
    %v207 = vld [vmem:[#allocation8 + $0x178] sm:$0xff]
    %v208 = vld [vmem:[#allocation8 + $0x180] sm:$0xff]
    %v209 = vld [vmem:[#allocation8 + $0x188] sm:$0xff]
    %v210 = vld [vmem:[#allocation8 + $0x190] sm:$0xff]
    %v211 = vld [vmem:[#allocation8 + $0x198] sm:$0xff]
    %v212 = vld [vmem:[#allocation8 + $0x1a0] sm:$0xff]
    %v213 = vld [vmem:[#allocation8 + $0x1a8] sm:$0xff]
    %v214 = vld [vmem:[#allocation8 + $0x1b0] sm:$0xff]
    %v215 = vld [vmem:[#allocation8 + $0x1b8] sm:$0xff]
    %v216 = vld [vmem:[#allocation8 + $0x1c0] sm:$0xff]
    %v217 = vld [vmem:[#allocation8 + $0x1c8] sm:$0xff]
    %v218 = vld [vmem:[#allocation8 + $0x1d0] sm:$0xff]
    %v219 = vld [vmem:[#allocation8 + $0x1d8] sm:$0xff]
    %v220 = vld [vmem:[#allocation8 + $0x1e0] sm:$0xff]
    %v221 = vld [vmem:[#allocation8 + $0x1e8] sm:$0xff]
    %v222 = vld [vmem:[#allocation8 + $0x1f0] sm:$0xff]
    %v223 = vld [vmem:[#allocation8 + $0x1f8] sm:$0xff]
    %v225 = vperm.slane %v97, 0
    %v226 = vperm.slane %v97, 1
    %229 = vmatpush.msra.mxu0 %v190
    %230 = vmatpush.msra.mxu0 %v188
    %231 = vmatpush.msra.mxu0 %v186
    %232 = vmatpush.msra.mxu0 %v184
    %233 = vmatpush.msra.mxu0 %v182
    %234 = vmatpush.msra.mxu0 %v180
    %235 = vmatpush.msra.mxu0 %v178
    %236 = vmatpush.msra.mxu0 %v176
    %237 = vmatpush.msra.mxu0 %v174
    %238 = vmatpush.msra.mxu0 %v172
    %239 = vmatpush.msra.mxu0 %v170
    %240 = vmatpush.msra.mxu0 %v168
    %241 = vmatpush.msra.mxu0 %v166
    %242 = vmatpush.msra.mxu0 %v164
    %243 = vmatpush.msra.mxu0 %v162
    %244 = vmatpush.msra.mxu0 %v160
    %245 = vmatmul.f32.gmra.mxu0 %v158
    %v246 = vpop.f32.mrf.mxu0
    %v247 = vadd.f32 %v225, %v246
    %248 = vdwg.mxu0
    %249 = vmatpush.msra.mxu0 %v222
    %250 = vmatpush.msra.mxu0 %v220
    %251 = vmatpush.msra.mxu0 %v218
    %252 = vmatpush.msra.mxu0 %v216
    %253 = vmatpush.msra.mxu0 %v214
    %254 = vmatpush.msra.mxu0 %v212
    %255 = vmatpush.msra.mxu0 %v210
    %256 = vmatpush.msra.mxu0 %v208
    %257 = vmatpush.msra.mxu0 %v206
    %258 = vmatpush.msra.mxu0 %v204
    %259 = vmatpush.msra.mxu0 %v202
    %260 = vmatpush.msra.mxu0 %v200
    %261 = vmatpush.msra.mxu0 %v198
    %262 = vmatpush.msra.mxu0 %v196
    %263 = vmatpush.msra.mxu0 %v194
    %264 = vmatpush.msra.mxu0 %v192
    %265 = vmatmul.f32.gmra.mxu0 %v159
    %v266 = vpop.f32.mrf.mxu0
    %v267 = vadd.f32 %v247, %v266
    %268 = vdwg.mxu0
    %269 = vmatpush.msra.mxu0 %v191
    %270 = vmatpush.msra.mxu0 %v189
    %271 = vmatpush.msra.mxu0 %v187
    %272 = vmatpush.msra.mxu0 %v185
    %273 = vmatpush.msra.mxu0 %v183
    %274 = vmatpush.msra.mxu0 %v181
    %275 = vmatpush.msra.mxu0 %v179
    %276 = vmatpush.msra.mxu0 %v177
    %277 = vmatpush.msra.mxu0 %v175
    %278 = vmatpush.msra.mxu0 %v173
    %279 = vmatpush.msra.mxu0 %v171
    %280 = vmatpush.msra.mxu0 %v169
    %281 = vmatpush.msra.mxu0 %v167
    %282 = vmatpush.msra.mxu0 %v165
    %283 = vmatpush.msra.mxu0 %v163
    %284 = vmatpush.msra.mxu0 %v161
    %285 = vmatmul.f32.gmra.mxu0 %v158
    %v286 = vpop.f32.mrf.mxu0
    %v287 = vadd.f32 %v226, %v286
    %288 = vdwg.mxu0
    %289 = vmatpush.msra.mxu0 %v223
    %290 = vmatpush.msra.mxu0 %v221
    %291 = vmatpush.msra.mxu0 %v219
    %292 = vmatpush.msra.mxu0 %v217
    %293 = vmatpush.msra.mxu0 %v215
    %294 = vmatpush.msra.mxu0 %v213
    %295 = vmatpush.msra.mxu0 %v211
    %296 = vmatpush.msra.mxu0 %v209
    %297 = vmatpush.msra.mxu0 %v207
    %298 = vmatpush.msra.mxu0 %v205
    %299 = vmatpush.msra.mxu0 %v203
    %300 = vmatpush.msra.mxu0 %v201
    %301 = vmatpush.msra.mxu0 %v199
    %302 = vmatpush.msra.mxu0 %v197
    %303 = vmatpush.msra.mxu0 %v195
    %304 = vmatpush.msra.mxu0 %v193
    %305 = vmatmul.f32.gmra.mxu0 %v159
    %v306 = vpop.f32.mrf.mxu0
    %v307 = vadd.f32 %v287, %v306
    %308 = vdwg.mxu0
    %v309 = vmax.f32 %v267, 0.0
    %v310 = vmax.f32 %v307, 0.0
    %v311 = vld [vmem:[#allocation10] sm:$0xff]
    %v312 = vld [vmem:[#allocation10 + $0x8] sm:$0xff]
    %v313 = vld [vmem:[#allocation10 + $0x10] sm:$0xff]
    %v314 = vld [vmem:[#allocation10 + $0x18] sm:$0xff]
    %v315 = vld [vmem:[#allocation10 + $0x20] sm:$0xff]
    %v316 = vld [vmem:[#allocation10 + $0x28] sm:$0xff]
    %v317 = vld [vmem:[#allocation10 + $0x30] sm:$0xff]
    %v318 = vld [vmem:[#allocation10 + $0x38] sm:$0xff]
    %v319 = vld [vmem:[#allocation10 + $0x40] sm:$0xff]
    %v320 = vld [vmem:[#allocation10 + $0x48] sm:$0xff]
    %v321 = vld [vmem:[#allocation10 + $0x50] sm:$0xff]
    %v322 = vld [vmem:[#allocation10 + $0x58] sm:$0xff]
    %v323 = vld [vmem:[#allocation10 + $0x60] sm:$0xff]
    %v324 = vld [vmem:[#allocation10 + $0x68] sm:$0xff]
    %v325 = vld [vmem:[#allocation10 + $0x70] sm:$0xff]
    %v326 = vld [vmem:[#allocation10 + $0x78] sm:$0xff]
    %v327 = vld [vmem:[#allocation10 + $0x80] sm:$0xff]
    %v328 = vld [vmem:[#allocation10 + $0x88] sm:$0xff]
    %v329 = vld [vmem:[#allocation10 + $0x90] sm:$0xff]
    %v330 = vld [vmem:[#allocation10 + $0x98] sm:$0xff]
    %v331 = vld [vmem:[#allocation10 + $0xa0] sm:$0xff]
    %v332 = vld [vmem:[#allocation10 + $0xa8] sm:$0xff]
    %v333 = vld [vmem:[#allocation10 + $0xb0] sm:$0xff]
    %v334 = vld [vmem:[#allocation10 + $0xb8] sm:$0xff]
    %v335 = vld [vmem:[#allocation10 + $0xc0] sm:$0xff]
    %v336 = vld [vmem:[#allocation10 + $0xc8] sm:$0xff]
    %v337 = vld [vmem:[#allocation10 + $0xd0] sm:$0xff]
    %v338 = vld [vmem:[#allocation10 + $0xd8] sm:$0xff]
    %v339 = vld [vmem:[#allocation10 + $0xe0] sm:$0xff]
    %v340 = vld [vmem:[#allocation10 + $0xe8] sm:$0xff]
    %v341 = vld [vmem:[#allocation10 + $0xf0] sm:$0xff]
    %v342 = vld [vmem:[#allocation10 + $0xf8] sm:$0xff]
    %v343 = vld [vmem:[#allocation10 + $0x100] sm:$0xff]
    %v344 = vld [vmem:[#allocation10 + $0x108] sm:$0xff]
    %v345 = vld [vmem:[#allocation10 + $0x110] sm:$0xff]
    %v346 = vld [vmem:[#allocation10 + $0x118] sm:$0xff]
    %v347 = vld [vmem:[#allocation10 + $0x120] sm:$0xff]
    %v348 = vld [vmem:[#allocation10 + $0x128] sm:$0xff]
    %v349 = vld [vmem:[#allocation10 + $0x130] sm:$0xff]
    %v350 = vld [vmem:[#allocation10 + $0x138] sm:$0xff]
    %v351 = vld [vmem:[#allocation10 + $0x140] sm:$0xff]
    %v352 = vld [vmem:[#allocation10 + $0x148] sm:$0xff]
    %v353 = vld [vmem:[#allocation10 + $0x150] sm:$0xff]
    %v354 = vld [vmem:[#allocation10 + $0x158] sm:$0xff]
    %v355 = vld [vmem:[#allocation10 + $0x160] sm:$0xff]
    %v356 = vld [vmem:[#allocation10 + $0x168] sm:$0xff]
    %v357 = vld [vmem:[#allocation10 + $0x170] sm:$0xff]
    %v358 = vld [vmem:[#allocation10 + $0x178] sm:$0xff]
    %v359 = vld [vmem:[#allocation10 + $0x180] sm:$0xff]
    %v360 = vld [vmem:[#allocation10 + $0x188] sm:$0xff]
    %v361 = vld [vmem:[#allocation10 + $0x190] sm:$0xff]
    %v362 = vld [vmem:[#allocation10 + $0x198] sm:$0xff]
    %v363 = vld [vmem:[#allocation10 + $0x1a0] sm:$0xff]
    %v364 = vld [vmem:[#allocation10 + $0x1a8] sm:$0xff]
    %v365 = vld [vmem:[#allocation10 + $0x1b0] sm:$0xff]
    %v366 = vld [vmem:[#allocation10 + $0x1b8] sm:$0xff]
    %v367 = vld [vmem:[#allocation10 + $0x1c0] sm:$0xff]
    %v368 = vld [vmem:[#allocation10 + $0x1c8] sm:$0xff]
    %v369 = vld [vmem:[#allocation10 + $0x1d0] sm:$0xff]
    %v370 = vld [vmem:[#allocation10 + $0x1d8] sm:$0xff]
    %v371 = vld [vmem:[#allocation10 + $0x1e0] sm:$0xff]
    %v372 = vld [vmem:[#allocation10 + $0x1e8] sm:$0xff]
    %v373 = vld [vmem:[#allocation10 + $0x1f0] sm:$0xff]
    %v374 = vld [vmem:[#allocation10 + $0x1f8] sm:$0xff]
    %v375 = vld [vmem:[#allocation10 + $0x200] sm:$0xff]
    %v376 = vld [vmem:[#allocation10 + $0x208] sm:$0xff]
    %v377 = vld [vmem:[#allocation10 + $0x210] sm:$0xff]
    %v378 = vld [vmem:[#allocation10 + $0x218] sm:$0xff]
    %v379 = vld [vmem:[#allocation10 + $0x220] sm:$0xff]
    %v380 = vld [vmem:[#allocation10 + $0x228] sm:$0xff]
    %v381 = vld [vmem:[#allocation10 + $0x230] sm:$0xff]
    %v382 = vld [vmem:[#allocation10 + $0x238] sm:$0xff]
    %v383 = vld [vmem:[#allocation10 + $0x240] sm:$0xff]
    %v384 = vld [vmem:[#allocation10 + $0x248] sm:$0xff]
    %v385 = vld [vmem:[#allocation10 + $0x250] sm:$0xff]
    %v386 = vld [vmem:[#allocation10 + $0x258] sm:$0xff]
    %v387 = vld [vmem:[#allocation10 + $0x260] sm:$0xff]
    %v388 = vld [vmem:[#allocation10 + $0x268] sm:$0xff]
    %v389 = vld [vmem:[#allocation10 + $0x270] sm:$0xff]
    %v390 = vld [vmem:[#allocation10 + $0x278] sm:$0xff]
    %v391 = vld [vmem:[#allocation10 + $0x280] sm:$0xff]
    %v392 = vld [vmem:[#allocation10 + $0x288] sm:$0xff]
    %v393 = vld [vmem:[#allocation10 + $0x290] sm:$0xff]
    %v394 = vld [vmem:[#allocation10 + $0x298] sm:$0xff]
    %v395 = vld [vmem:[#allocation10 + $0x2a0] sm:$0xff]
    %v396 = vld [vmem:[#allocation10 + $0x2a8] sm:$0xff]
    %v397 = vld [vmem:[#allocation10 + $0x2b0] sm:$0xff]
    %v398 = vld [vmem:[#allocation10 + $0x2b8] sm:$0xff]
    %v399 = vld [vmem:[#allocation10 + $0x2c0] sm:$0xff]
    %v400 = vld [vmem:[#allocation10 + $0x2c8] sm:$0xff]
    %v401 = vld [vmem:[#allocation10 + $0x2d0] sm:$0xff]
    %v402 = vld [vmem:[#allocation10 + $0x2d8] sm:$0xff]
    %v403 = vld [vmem:[#allocation10 + $0x2e0] sm:$0xff]
    %v404 = vld [vmem:[#allocation10 + $0x2e8] sm:$0xff]
    %v405 = vld [vmem:[#allocation10 + $0x2f0] sm:$0xff]
    %v406 = vld [vmem:[#allocation10 + $0x2f8] sm:$0xff]
    %v408 = vperm.slane %v99, 0
    %v409 = vperm.slane %v99, 1
    %v410 = vperm.slane %v99, 2
    %414 = vmatpush.msra.mxu0 %v356
    %415 = vmatpush.msra.mxu0 %v353
    %416 = vmatpush.msra.mxu0 %v350
    %417 = vmatpush.msra.mxu0 %v347
    %418 = vmatpush.msra.mxu0 %v344
    %419 = vmatpush.msra.mxu0 %v341
    %420 = vmatpush.msra.mxu0 %v338
    %421 = vmatpush.msra.mxu0 %v335
    %422 = vmatpush.msra.mxu0 %v332
    %423 = vmatpush.msra.mxu0 %v329
    %424 = vmatpush.msra.mxu0 %v326
    %425 = vmatpush.msra.mxu0 %v323
    %426 = vmatpush.msra.mxu0 %v320
    %427 = vmatpush.msra.mxu0 %v317
    %428 = vmatpush.msra.mxu0 %v314
    %429 = vmatpush.msra.mxu0 %v311
    %430 = vmatmul.f32.gmra.mxu0 %v309
    %v431 = vpop.f32.mrf.mxu0
    %v432 = vadd.f32 %v408, %v431
    %433 = vdwg.mxu0
    %434 = vmatpush.msra.mxu0 %v404
    %435 = vmatpush.msra.mxu0 %v401
    %436 = vmatpush.msra.mxu0 %v398
    %437 = vmatpush.msra.mxu0 %v395
    %438 = vmatpush.msra.mxu0 %v392
    %439 = vmatpush.msra.mxu0 %v389
    %440 = vmatpush.msra.mxu0 %v386
    %441 = vmatpush.msra.mxu0 %v383
    %442 = vmatpush.msra.mxu0 %v380
    %443 = vmatpush.msra.mxu0 %v377
    %444 = vmatpush.msra.mxu0 %v374
    %445 = vmatpush.msra.mxu0 %v371
    %446 = vmatpush.msra.mxu0 %v368
    %447 = vmatpush.msra.mxu0 %v365
    %448 = vmatpush.msra.mxu0 %v362
    %449 = vmatpush.msra.mxu0 %v359
    %450 = vmatmul.f32.gmra.mxu0 %v310
    %v451 = vpop.f32.mrf.mxu0
    %v452 = vadd.f32 %v432, %v451
    %453 = vdwg.mxu0
    %454 = vmatpush.msra.mxu0 %v357
    %455 = vmatpush.msra.mxu0 %v354
    %456 = vmatpush.msra.mxu0 %v351
    %457 = vmatpush.msra.mxu0 %v348
    %458 = vmatpush.msra.mxu0 %v345
    %459 = vmatpush.msra.mxu0 %v342
    %460 = vmatpush.msra.mxu0 %v339
    %461 = vmatpush.msra.mxu0 %v336
    %462 = vmatpush.msra.mxu0 %v333
    %463 = vmatpush.msra.mxu0 %v330
    %464 = vmatpush.msra.mxu0 %v327
    %465 = vmatpush.msra.mxu0 %v324
    %466 = vmatpush.msra.mxu0 %v321
    %467 = vmatpush.msra.mxu0 %v318
    %468 = vmatpush.msra.mxu0 %v315
    %469 = vmatpush.msra.mxu0 %v312
    %470 = vmatmul.f32.gmra.mxu0 %v309
    %v471 = vpop.f32.mrf.mxu0
    %v472 = vadd.f32 %v409, %v471
    %473 = vdwg.mxu0
    %474 = vmatpush.msra.mxu0 %v405
    %475 = vmatpush.msra.mxu0 %v402
    %476 = vmatpush.msra.mxu0 %v399
    %477 = vmatpush.msra.mxu0 %v396
    %478 = vmatpush.msra.mxu0 %v393
    %479 = vmatpush.msra.mxu0 %v390
    %480 = vmatpush.msra.mxu0 %v387
    %481 = vmatpush.msra.mxu0 %v384
    %482 = vmatpush.msra.mxu0 %v381
    %483 = vmatpush.msra.mxu0 %v378
    %484 = vmatpush.msra.mxu0 %v375
    %485 = vmatpush.msra.mxu0 %v372
    %486 = vmatpush.msra.mxu0 %v369
    %487 = vmatpush.msra.mxu0 %v366
    %488 = vmatpush.msra.mxu0 %v363
    %489 = vmatpush.msra.mxu0 %v360
    %490 = vmatmul.f32.gmra.mxu0 %v310
    %v491 = vpop.f32.mrf.mxu0
    %v492 = vadd.f32 %v472, %v491
    %493 = vdwg.mxu0
    %494 = vmatpush.msra.mxu0 %v358
    %495 = vmatpush.msra.mxu0 %v355
    %496 = vmatpush.msra.mxu0 %v352
    %497 = vmatpush.msra.mxu0 %v349
    %498 = vmatpush.msra.mxu0 %v346
    %499 = vmatpush.msra.mxu0 %v343
    %500 = vmatpush.msra.mxu0 %v340
    %501 = vmatpush.msra.mxu0 %v337
    %502 = vmatpush.msra.mxu0 %v334
    %503 = vmatpush.msra.mxu0 %v331
    %504 = vmatpush.msra.mxu0 %v328
    %505 = vmatpush.msra.mxu0 %v325
    %506 = vmatpush.msra.mxu0 %v322
    %507 = vmatpush.msra.mxu0 %v319
    %508 = vmatpush.msra.mxu0 %v316
    %509 = vmatpush.msra.mxu0 %v313
    %510 = vmatmul.f32.gmra.mxu0 %v309
    %v511 = vpop.f32.mrf.mxu0
    %v512 = vadd.f32 %v410, %v511
    %513 = vdwg.mxu0
    %514 = vmatpush.msra.mxu0 %v406
    %515 = vmatpush.msra.mxu0 %v403
    %516 = vmatpush.msra.mxu0 %v400
    %517 = vmatpush.msra.mxu0 %v397
    %518 = vmatpush.msra.mxu0 %v394
    %519 = vmatpush.msra.mxu0 %v391
    %520 = vmatpush.msra.mxu0 %v388
    %521 = vmatpush.msra.mxu0 %v385
    %522 = vmatpush.msra.mxu0 %v382
    %523 = vmatpush.msra.mxu0 %v379
    %524 = vmatpush.msra.mxu0 %v376
    %525 = vmatpush.msra.mxu0 %v373
    %526 = vmatpush.msra.mxu0 %v370
    %527 = vmatpush.msra.mxu0 %v367
    %528 = vmatpush.msra.mxu0 %v364
    %529 = vmatpush.msra.mxu0 %v361
    %530 = vmatmul.f32.gmra.mxu0 %v310
    %v531 = vpop.f32.mrf.mxu0
    %v532 = vadd.f32 %v512, %v531
    %533 = vdwg.mxu0
    %534 = vst [vmem:[#allocation11] sm:$0xff] %v452
    %535 = vst [vmem:[#allocation11 + $0x8] sm:$0xff] %v492
    %536 = vst [vmem:[#allocation11 + $0x10] sm:$0xff] %v532
    // Predicated region
    $region42: #{tpu_custom_call.1} parent=1 // pred_check
      _
    $region43: #{tpu_custom_call.1} parent=1 // pred_check_branch
      %538 = sbr.rel (0) target = $region45
    $region44: #{tpu_custom_call.1} parent=1 // pred_region
      %540 = vsyncadd [#allocation4], 0
      %s542 = sshll.u32 [#allocation11], 4
      %s543 = int_to_ptr.vmem [resolvable:$true] %s542
      %s544 = sshll.u32 %s5, 4
      %s545 = int_to_ptr.hbm [resolvable:$true] %s544
      %547 = dma.vmem_to_hbm [thread:$0]  %s543, 384, %s545, [#allocation4]
    $region45: #{tpu_custom_call.1} parent=1 // pred_fallthru
      _
    // Predicated region
    $region46: #{tpu_custom_call.1} parent=1 // pred_check
      _
    $region47: #{tpu_custom_call.1} parent=1 // pred_check_branch
      %549 = sbr.rel (0) target = $region49
    $region48: #{tpu_custom_call.1} parent=1 // pred_region
      %551 = dma.done [#allocation4], 384
    $region49: #{tpu_custom_call.1} parent=1 // pred_fallthru
      _
    %552 = vsyncpa [#allocation3], 1
    %553 = vsyncpa [#allocation6], 1
    %554 = vsyncpa [#allocation9], 1
    %555 = vsyncpa [#allocation4], 1

</llo_original>
